<compile_context>
chip_gen: v6e
topology: v6e:2x2x1
jax: 0.10.0
libtpu: 0.0.40
codegen_flags: <defaults>
</compile_context>

<pallas_src>
import math
from functools import partial

import jax
import jax.numpy as jnp
from jax.experimental import pallas as pl
from jax.experimental.pallas import tpu as pltpu


_TARGET_BLOCK_BYTES = 4 * 1024 * 1024   # ~4 MiB blocks (see perf notes above)
_MIN_BLOCK_BYTES = 1 * 1024 * 1024      # keep blocks >= 1 MiB when rebalancing
_MAX_LANES = 2048
_LANE = 128


def _round_up(a, b):
    return (a + b - 1) // b * b


def _lsq_act_kernel(alpha_ref, x_ref, o_ref, *, Qp, Qn, fast_recip):
    # ReLU (the wrapped activation_func).
    x = jnp.maximum(x_ref[...], 0.0)
    alpha = alpha_ref[0]
    if fast_recip:
        # Once-per-step scalar reciprocal + vector multiply (v7x roofline).
        q_x = jnp.round(x * (1.0 / alpha))
    else:
        # Exact divide for bit-parity with the PyTorch reference.
        q_x = jnp.round(x / alpha)
    # After ReLU and with Qn == 0 the lower clamp is redundant; only clamp Qp.
    if Qn != 0:
        q_x = jnp.maximum(q_x, float(Qn))
    q_x = jnp.minimum(q_x, float(Qp))
    o_ref[...] = (q_x * alpha).astype(o_ref.dtype)


def _choose_layout(n_elem, itemsize, target_block_bytes=_TARGET_BLOCK_BYTES):
    """Pick (lane_width, tile_rows, rows, grid, needs_pad) for a lane-dense slab.

    The flat array is viewed as (rows, w).  `w` is the largest power-of-two
    lane multiple (<= 2048) dividing n_elem so the wrapper stays copy-free;
    otherwise fall back to 128 lanes with a small pad.  The grid runs over the
    un-padded rows and Pallas masks the ragged last block.
    """
    sublane = max(8, 32 // itemsize)   # 8 for f32, 16 for bf16, ...

    w = 0
    for cand in (2048, 1024, 512, 256, 128):
        if n_elem % cand == 0:
            w = cand
            break
    needs_pad = w == 0
    if needs_pad:
        w = _LANE

    rows = pl.cdiv(n_elem, w)

    target_rows = max(sublane, (target_block_bytes // itemsize) // w)
    target_rows = _round_up(target_rows, sublane)

    if rows <= target_rows:
        # Single block covering the whole (rows, w) array (always legal:
        # block dims equal the full array dims).
        tile_rows = rows
        grid = 1
    else:
        # Multiple of the sublane count; the last block overhangs and Pallas
        # masks it -- no row padding / output slicing in the wrapper.
        tile_rows = target_rows
        grid = pl.cdiv(rows, tile_rows)

    # v7x has 2 TensorCores sharing the "parallel" grid axis: prefer an even
    # number of steps so neither core idles, but only when each resulting
    # block stays >= ~1 MiB (keeps per-step overhead negligible on 1-TC
    # v5e/v6e and preserves HBM-roofline-sized transfers).
    if grid % 2 == 1:
        alt_grid = grid + 1
        alt_tile = _round_up(pl.cdiv(rows, alt_grid), sublane)
        if (alt_tile <= rows
                and alt_tile * w * itemsize >= _MIN_BLOCK_BYTES
                and pl.cdiv(rows, alt_tile) % 2 == 0):
            tile_rows = alt_tile
            grid = pl.cdiv(rows, alt_tile)

    return w, tile_rows, rows, grid, needs_pad


def lsq_activations_forward(x, alpha, *, bw=8, is_quantize=True, fast_recip=False):
    """x: any-shape float array (e.g. NCHW); alpha: (1,) float32, alpha > 0."""
    Qn = 0
    Qp = 2 ** bw - 1
    # g is only used by the backward pass in the reference; computed for parity.
    _g = 1.0 / math.sqrt(x.size * Qp)  # noqa: F841

    if not is_quantize:
        # Plain activation: already a single fused XLA elementwise op at the
        # HBM roofline -- a custom call plus reshapes would only add overhead.
        return jnp.maximum(x, jnp.zeros_like(x))

    orig_shape = x.shape
    n_elem = x.size
    w, tile_rows, rows, grid, needs_pad = _choose_layout(n_elem, x.dtype.itemsize)

    xf = x.reshape(-1)
    if needs_pad:
        # Rare path (n_elem not a multiple of 128).  Zero padding is harmless:
        # relu(0)=0 and quantize(0)=0; the tail is sliced off below.
        xf = jnp.pad(xf, (0, rows * w - n_elem))
    x2d = xf.reshape(rows, w)

    kernel = partial(_lsq_act_kernel, Qp=Qp, Qn=Qn, fast_recip=fast_recip)

    out2d = pl.pallas_call(
        kernel,
        out_shape=jax.ShapeDtypeStruct((rows, w), x.dtype),
        grid=(grid,),
        in_specs=[
            pl.BlockSpec(memory_space=pltpu.SMEM),              # alpha scalar
            pl.BlockSpec((tile_rows, w), lambda i: (i, 0)),      # x tile
        ],
        out_specs=pl.BlockSpec((tile_rows, w), lambda i: (i, 0)),
        compiler_params=pltpu.CompilerParams(
            dimension_semantics=("parallel",),
            vmem_limit_bytes=32 * 1024 * 1024,
        ),
    )(alpha, x2d)

    out = out2d.reshape(-1)
    if needs_pad:
        out = out[:n_elem]
    return out.reshape(orig_shape)


def _reference(x, alpha, *, bw=8, is_quantize=True):
    Qn = 0
    Qp = 2 ** bw - 1
    x = jnp.maximum(x, 0.0)
    if is_quantize:
        q_x = jnp.clip(jnp.round(x / alpha[0]), Qn, Qp)
        return q_x * alpha[0]
    return x


if __name__ == "__main__":
    key = jax.random.PRNGKey(0)
    alpha = jnp.array([0.05], dtype=jnp.float32)  # 1-element learnable scale

    # Primary (small) shape consistent with the module: NCHW activations.
    x = jax.random.normal(key, (2, 4, 16, 16), dtype=jnp.float32) * 3.0
    out = jax.block_until_ready(lsq_activations_forward(x, alpha, bw=8, is_quantize=True))
    ref = _reference(x, alpha, bw=8, is_quantize=True)
    assert out.shape == x.shape
    assert jnp.allclose(out, ref, atol=1e-6), "mismatch vs reference (small shape)"

    # Ragged shape: exercises the (rare) pad-and-slice fallback (size % 128 != 0).
    k1, k2 = jax.random.split(key)
    x_rag = jax.random.normal(k1, (2, 3, 17, 19), dtype=jnp.float32) * 3.0
    out_rag = jax.block_until_ready(lsq_activations_forward(x_rag, alpha, bw=8, is_quantize=True))
    ref_rag = _reference(x_rag, alpha, bw=8, is_quantize=True)
    assert out_rag.shape == x_rag.shape
    assert jnp.allclose(out_rag, ref_rag, atol=1e-6), "mismatch vs reference (ragged shape)"

    # Moderately sized input: copy-free wrapper, even 2-step grid with ~1.6 MiB
    # blocks and a masked overhanging last block (392 rows, 200-row tiles).
    x_big = jax.random.normal(k2, (8, 32, 56, 56), dtype=jnp.float32) * 3.0
    out_big = jax.block_until_ready(lsq_activations_forward(x_big, alpha, bw=8, is_quantize=True))
    ref_big = _reference(x_big, alpha, bw=8, is_quantize=True)
    assert out_big.shape == x_big.shape
    assert jnp.allclose(out_big, ref_big, atol=1e-6), "mismatch vs reference (multi-block)"

    # Fast reciprocal-multiply path (v7x roofline): may differ from the exact
    # divide by at most one quantization step at .5 rounding boundaries.
    out_fast = jax.block_until_ready(
        lsq_activations_forward(x_big, alpha, bw=8, is_quantize=True, fast_recip=True))
    assert jnp.allclose(out_fast, ref_big, atol=float(alpha[0]) + 1e-6), \
        "mismatch vs reference (fast_recip path)"

    # Non-quantized path: plain activation (bypasses the custom call on purpose).
    out_noq = jax.block_until_ready(lsq_activations_forward(x, alpha, bw=8, is_quantize=False))
    assert jnp.allclose(out_noq, jnp.maximum(x, 0.0), atol=1e-6)

    print("KERNEL_OK")
</pallas_src>

<mosaic_0001>
module attributes {stable_mosaic.version = 11 : i64} {
  func.func @_lsq_act_kernel(%arg0: i32, %arg1: memref<1xf32, #tpu.memory_space<smem>>, %arg2: memref<1x2048xf32, #tpu.memory_space<vmem>>, %arg3: memref<1x2048xf32, #tpu.memory_space<vmem>>) attributes {dimension_semantics = [#tpu.dimension_semantics<parallel>], iteration_bounds = array<i64: 1>, scalar_prefetch = 0 : i64, scratch_operands = 0 : i64, tpu.core_type = #tpu.core_type<tc>, window_params = [{transform_indices = @transform_0, window_bounds = array<i64: 1>}, {transform_indices = @transform_1, window_bounds = array<i64: 1, 2048>}, {transform_indices = @transform_2, window_bounds = array<i64: 1, 2048>}]} {
    %c0 = arith.constant 0 : index
    %c0_0 = arith.constant 0 : index
    %0 = vector.load %arg2[%c0, %c0_0] : memref<1x2048xf32, #tpu.memory_space<vmem>>, vector<1x2048xf32>
    %cst = arith.constant 0.000000e+00 : f32
    %1 = vector.broadcast %cst : f32 to vector<1x2048xf32>
    %2 = arith.maximumf %0, %1 : vector<1x2048xf32>
    %c0_1 = arith.constant 0 : index
    %3 = memref.load %arg1[%c0_1] : memref<1xf32, #tpu.memory_space<smem>>
    %4 = vector.broadcast %3 : f32 to vector<1x2048xf32>
    %5 = arith.divf %2, %4 : vector<1x2048xf32>
    %6 = math.roundeven %5 : vector<1x2048xf32>
    %cst_2 = arith.constant 2.550000e+02 : f32
    %7 = vector.broadcast %cst_2 : f32 to vector<1x2048xf32>
    %8 = arith.minimumf %6, %7 : vector<1x2048xf32>
    %9 = vector.broadcast %3 : f32 to vector<1x2048xf32>
    %10 = arith.mulf %8, %9 : vector<1x2048xf32>
    %c0_3 = arith.constant 0 : index
    %c0_4 = arith.constant 0 : index
    %11 = vector.load %arg3[%c0_3, %c0_4] : memref<1x2048xf32, #tpu.memory_space<vmem>>, vector<1x2048xf32>
    tpu.vector_store %arg3[%c0_3, %c0_4], %10 {strides = array<i32>} : memref<1x2048xf32, #tpu.memory_space<vmem>>, vector<1x2048xf32>,
    return
  }
  func.func @transform_0(%arg0: i32) -> i32 {
    %c0_i32 = arith.constant 0 : i32
    %c0_i32_0 = arith.constant 0 : i32
    return %c0_i32 : i32
  }
  func.func @transform_1(%arg0: i32) -> (i32, i32) {
    %c0_i32 = arith.constant 0 : i32
    %c0_i32_0 = arith.constant 0 : i32
    return %arg0, %c0_i32 : i32, i32
  }
  func.func @transform_2(%arg0: i32) -> (i32, i32) {
    %c0_i32 = arith.constant 0 : i32
    %c0_i32_0 = arith.constant 0 : i32
    return %arg0, %c0_i32 : i32, i32
  }
}

</mosaic_0001>

<llo_original>
// kernel: tpu_custom_call.1
$region0: #{tpu_custom_call.1}
  #allocation0 [shape = 'u32[]', space=smem, size = 0x4, offset = 0x4, fixed_abs, tag = 'smem constant byte address 0x4 - core index']
  #allocation1 [shape = 'u32[144,128]{1,0:T(1,128)}', space=vmem, size = 0x12000, scoped, tag = 'internal scratch']
  #allocation2 [shape = 'f32[1]{0:T(128)S(6)}', space=smem, size = 0x200, scoped, tag = 'scoped memory for tpu_custom_call.1']
  %s0 = inlined_call_operand.<no memory space> [shape: f32[1], index: 0, kind: input, shape index: {}]
  %s1 = inlined_call_operand.hbm [shape: f32[1,2048], index: 1, kind: input, shape index: {}]
  %s2 = inlined_call_operand.hbm [shape: f32[1,2048], index: 2, kind: output, shape index: {}]
  %s3 = sld [smem:[#allocation0]]
  $region22: #{tpu_custom_call.1} parent=0
    _
  %s5 = ssub.s32 1, %s3
  %s6 = scalar_select 0, %s5, %s3
  %7 = sst [smem:[#allocation2]] %s0
  $region1: #{tpu_custom_call.1} parent=0
    #allocation3 [shape = 'u8[8192]{0}', space=vmem, size = 0x2000, scoped, tag = 'input window, operand 1, single buffered']
    #allocation4 [shape = 's32[1]{0}', space=sflag, size = 0x4, scoped, tag = 'scoped memory for tpu_custom_call.1']
    #allocation5 [shape = 's32[1]{0}', space=sflag, size = 0x4, scoped, tag = 'scoped memory for tpu_custom_call.1']
    #allocation6 [shape = 'u8[8192]{0}', space=vmem, size = 0x2000, scoped, tag = 'output window, operand 0, single buffered']
    %8 = vsyncpa [#allocation4], 0
    %9 = vsyncpa [#allocation5], 0
    // Predicated region
    $region2: #{tpu_custom_call.1} parent=1 // pred_check
      _
    $region3: #{tpu_custom_call.1} parent=1 // pred_check_branch
      %11 = sbr.rel (0) target = $region5
    $region4: #{tpu_custom_call.1} parent=1 // pred_region
      _
    $region5: #{tpu_custom_call.1} parent=1 // pred_fallthru
      _
    // Predicated region
    $region6: #{tpu_custom_call.1} parent=1 // pred_check
      _
    $region7: #{tpu_custom_call.1} parent=1 // pred_check_branch
      %13 = sbr.rel (0) target = $region9
    $region8: #{tpu_custom_call.1} parent=1 // pred_region
      %s15 = ssub.s32 256, 256
      %16 = vsyncadd [#allocation4], %s15
      %s18 = sshll.u32 [#allocation3], 4
      %s19 = int_to_ptr.vmem [resolvable:$true] %s18
      %21 = dma.hbm_to_vmem [thread:$0]  %s1, 256, %s19, [#allocation4]
    $region9: #{tpu_custom_call.1} parent=1 // pred_fallthru
      _
    // Predicated region
    $region10: #{tpu_custom_call.1} parent=1 // pred_check
      _
    $region11: #{tpu_custom_call.1} parent=1 // pred_check_branch
      %23 = sbr.rel (0) target = $region13
    $region12: #{tpu_custom_call.1} parent=1 // pred_region
      %24 = dma.done [#allocation4], 256
    $region13: #{tpu_custom_call.1} parent=1 // pred_fallthru
      _
    %v25 = vld [vmem:[#allocation3] sm:$0xff]
    %v26 = vld [vmem:[#allocation3 + $0x8] sm:$0xff]
    %v27 = vmax.f32 %v25, 0.0
    %v28 = vmax.f32 %v26, 0.0
    %s29 = sld [smem:[#allocation2]]
    %v30 = vstv %s29
    %v31 = vrcp.pop %v30
    %v32 = vmul.f32 %v27, %v31
    %v33 = vmul.f32 %v28, %v31
    %v34 = vround.ne.pseudo %v32
    %v35 = vround.ne.pseudo %v33
    %v36 = vmin.f32 %v34, 255.0
    %v37 = vmin.f32 %v35, 255.0
    %v38 = vmul.f32 %v36, %v30
    %v39 = vmul.f32 %v37, %v30
    %40 = vst [vmem:[#allocation6] sm:$0xff] %v38
    %41 = vst [vmem:[#allocation6 + $0x8] sm:$0xff] %v39
    // Predicated region
    $region14: #{tpu_custom_call.1} parent=1 // pred_check
      _
    $region15: #{tpu_custom_call.1} parent=1 // pred_check_branch
      %43 = sbr.rel (0) target = $region17
    $region16: #{tpu_custom_call.1} parent=1 // pred_region
      %s45 = ssub.s32 256, 256
      %46 = vsyncadd [#allocation5], %s45
      %s48 = sshll.u32 [#allocation6], 4
      %s49 = int_to_ptr.vmem [resolvable:$true] %s48
      %51 = dma.vmem_to_hbm [thread:$0]  %s49, 256, %s2, [#allocation5]
    $region17: #{tpu_custom_call.1} parent=1 // pred_fallthru
      _
    // Predicated region
    $region18: #{tpu_custom_call.1} parent=1 // pred_check
      _
    $region19: #{tpu_custom_call.1} parent=1 // pred_check_branch
      %53 = sbr.rel (0) target = $region21
    $region20: #{tpu_custom_call.1} parent=1 // pred_region
      %54 = dma.done [#allocation5], 256
    $region21: #{tpu_custom_call.1} parent=1 // pred_fallthru
      _
    %55 = vsyncpa [#allocation4], 1
    %56 = vsyncpa [#allocation5], 1

</llo_original>
